<compile_context>
chip_gen: v5e
topology: v5e:2x2
jax: 0.10.0
libtpu: 0.0.40
codegen_flags: <defaults>
</compile_context>

<pallas_src>
import functools
import math

import jax
import jax.numpy as jnp
import numpy as np
from jax.experimental import pallas as pl
from jax.experimental.pallas import tpu as pltpu

LN_EPS = 1e-5                       # PyTorch nn.LayerNorm default eps
_INV_SQRT2 = 1.0 / math.sqrt(2.0)


def _gelu_exact(v):
    # PyTorch nn.GELU() default: 0.5 * x * (1 + erf(x / sqrt(2)))
    return 0.5 * v * (1.0 + jax.lax.erf(v * _INV_SQRT2))


def nrn_block_adapter_kernel(
    x_ref,                         # (TB, N, D) input rows
    g1_ref, bl1_ref,               # ntr_block LayerNorm(features): (1, 1, D) each
    w1_ref, b1_ref,                # ntr FF fc1: (K, N), (K, 1)   (torch (out, in) layout)
    w2_ref, b2_ref,                # ntr FF fc2: (N, K), (N, 1)
    ga_ref, ba_ref,                # per-neighbor adapter LayerNorms: (N, D) each
    w3_ref, b3_ref,                # nar FF fc1: (D, F), (1, F)
    w4_ref, b4_ref,                # nar FF fc2: (F, D), (1, D)
    out_ref,
):
    x = x_ref[...].astype(jnp.float32)                     # (TB, N, D)
    TB, N, D = x.shape
    K = w1_ref.shape[0]

    # ---- ntr_block: LayerNorm over features --------------------------------
    m = jnp.mean(x, axis=-1, keepdims=True)
    v = jnp.mean((x - m) ** 2, axis=-1, keepdims=True)
    x_ln = (x - m) * jax.lax.rsqrt(v + LN_EPS) * g1_ref[...] + bl1_ref[...]

    # ---- ntr_block: FeedForward along the neighbor axis --------------------
    # After Rearrange('b n d -> b d n') the FFN contracts over n.  Keeping the
    # feature axis on lanes, compute it as batched matmuls with the tiny
    # weights broadcast over the batch tile (no activation transpose needed).
    # TODO(synk): nn.Dropout(0.2) layers are treated as identity (eval mode).
    w1b = jnp.broadcast_to(w1_ref[...][None], (TB, K, N))          # (TB, K, N)
    h = jnp.einsum("bkn,bnd->bkd", w1b, x_ln,
                   preferred_element_type=jnp.float32)             # (TB, K, D)
    h = _gelu_exact(h + b1_ref[...][None])
    w2b = jnp.broadcast_to(w2_ref[...][None], (TB, N, K))          # (TB, N, K)
    ntr = jnp.einsum("bnk,bkd->bnd", w2b, h,
                     preferred_element_type=jnp.float32)           # (TB, N, D)
    ntr = ntr + b2_ref[...][None]
    x1 = x + ntr                                                   # residual

    # ---- adapter: per-neighbor LayerNorm over features ----------------------
    m1 = jnp.mean(x1, axis=-1, keepdims=True)
    v1 = jnp.mean((x1 - m1) ** 2, axis=-1, keepdims=True)
    x2 = (x1 - m1) * jax.lax.rsqrt(v1 + LN_EPS) * ga_ref[...][None] + ba_ref[...][None]

    # ---- nar_block: row-wise FeedForward over features ----------------------
    # Flatten (TB, N, D) -> (TB*N, D) so both matmuls see all rows at once.
    x2f = x2.reshape(TB * N, D)
    h2 = jnp.dot(x2f, w3_ref[...], preferred_element_type=jnp.float32) + b3_ref[...]
    h2 = _gelu_exact(h2)
    y2 = jnp.dot(h2, w4_ref[...], preferred_element_type=jnp.float32) + b4_ref[...]
    out = x2f + y2                                                 # residual

    out_ref[...] = out.reshape(TB, N, D).astype(out_ref.dtype)


def _pick_batch_tile(B, N, target_rows):
    """Largest batch tile dividing B with ~target_rows rows per grid step,
    keeping >= 2 grid steps when possible (v7x has 2 TensorCores)."""
    cap = max(1, target_rows // max(N, 1))
    cap = min(cap, B)
    if B >= 2:
        cap = min(cap, B // 2)
    cap = max(cap, 1)
    while B % cap:
        cap -= 1
    return cap


@functools.partial(jax.jit, static_argnames=("target_rows",))
def nrn_block_adapter_forward(x, params, *, target_rows=512):
    B, N, D = x.shape
    K = params["w_ntr1"].shape[0]
    F = params["w_nar1"].shape[0]

    TB = _pick_batch_tile(B, N, target_rows)
    grid = (B // TB,)

    # Kernel-friendly parameter views (trace-time reshapes/transposes only).
    g1 = params["g_ln1"].reshape(1, 1, D)
    bl1 = params["b_ln1"].reshape(1, 1, D)
    w1 = params["w_ntr1"]                        # (K, N)
    b1 = params["b_ntr1"].reshape(K, 1)
    w2 = params["w_ntr2"]                        # (N, K)
    b2 = params["b_ntr2"].reshape(N, 1)
    ga = params["g_ad"]                          # (N, D)
    ba = params["b_ad"]                          # (N, D)
    w3 = params["w_nar1"].T                      # (D, F)
    b3 = params["b_nar1"].reshape(1, F)
    w4 = params["w_nar2"].T                      # (F, D)
    b4 = params["b_nar2"].reshape(1, D)

    full2 = lambda s: pl.BlockSpec(s, lambda i: (0, 0))
    full3 = lambda s: pl.BlockSpec(s, lambda i: (0, 0, 0))

    weight_elems = sum(int(np.prod(a.shape)) for a in
                       (g1, bl1, w1, b1, w2, b2, ga, ba, w3, b3, w4, b4))
    flops = 4 * B * N * D * (K + F)
    transcendentals = B * D * K + B * N * F
    bytes_accessed = 4 * (2 * B * N * D + weight_elems)

    vmem_need = 4 * (4 * TB * N * D                       # x + out, double-buffered
                     + 2 * weight_elems                   # weights, double-buffered
                     + TB * (K * (N + D) + N * (K + F) + 6 * N * D))   # activations
    vmem_limit = int(min(max(2 * vmem_need, 32 * 1024 * 1024), 64 * 1024 * 1024))

    out = pl.pallas_call(
        nrn_block_adapter_kernel,
        out_shape=jax.ShapeDtypeStruct((B, N, D), x.dtype),
        grid_spec=pltpu.PrefetchScalarGridSpec(
            num_scalar_prefetch=0,
            grid=grid,
            in_specs=[
                pl.BlockSpec((TB, N, D), lambda i: (i, 0, 0)),   # x batch tile
                full3((1, 1, D)), full3((1, 1, D)),              # ntr LayerNorm
                full2((K, N)), full2((K, 1)),                    # ntr fc1
                full2((N, K)), full2((N, 1)),                    # ntr fc2
                full2((N, D)), full2((N, D)),                    # adapter LNs
                full2((D, F)), full2((1, F)),                    # nar fc1
                full2((F, D)), full2((1, D)),                    # nar fc2
            ],
            out_specs=pl.BlockSpec((TB, N, D), lambda i: (i, 0, 0)),
        ),
        compiler_params=pltpu.CompilerParams(
            dimension_semantics=("parallel",),
            vmem_limit_bytes=vmem_limit,
        ),
        cost_estimate=pl.CostEstimate(
            flops=flops, transcendentals=transcendentals,
            bytes_accessed=bytes_accessed),
    )(x, g1, bl1, w1, b1, w2, b2, ga, ba, w3, b3, w4, b4)
    return out


def init_params(key, features, k_neighbor, feature_dim, k_dim):
    D, N, F, K = features, k_neighbor, feature_dim, k_dim
    ks = jax.random.split(key, 12)
    rnd = lambda k, shape, s: jax.random.normal(k, shape, jnp.float32) * s
    return dict(
        # ntr_block[0]: LayerNorm(features)
        g_ln1=1.0 + 0.1 * rnd(ks[0], (D,), 1.0),
        b_ln1=0.1 * rnd(ks[1], (D,), 1.0),
        # ntr_block FeedForward(K_neighbor, K_dim)  (torch Linear layout: (out, in))
        w_ntr1=rnd(ks[2], (K, N), 1.0 / math.sqrt(N)),
        b_ntr1=0.1 * rnd(ks[3], (K,), 1.0),
        w_ntr2=rnd(ks[4], (N, K), 1.0 / math.sqrt(K)),
        b_ntr2=0.1 * rnd(ks[5], (N,), 1.0),
        # adapter: K_neighbor independent LayerNorm(features)
        g_ad=1.0 + 0.1 * rnd(ks[6], (N, D), 1.0),
        b_ad=0.1 * rnd(ks[7], (N, D), 1.0),
        # nar_block FeedForward(features, feature_dim)
        w_nar1=rnd(ks[8], (F, D), 1.0 / math.sqrt(D)),
        b_nar1=0.1 * rnd(ks[9], (F,), 1.0),
        w_nar2=rnd(ks[10], (D, F), 1.0 / math.sqrt(F)),
        b_nar2=0.1 * rnd(ks[11], (D,), 1.0),
    )


def _layernorm_ref(v, g, b):
    m = v.mean(axis=-1, keepdims=True)
    var = ((v - m) ** 2).mean(axis=-1, keepdims=True)
    return (v - m) * jax.lax.rsqrt(var + LN_EPS) * g + b


def reference_forward(x, p):
    # Pure-JAX mirror of NRN_block_adapter.forward (dropout = identity / eval).
    y = _layernorm_ref(x, p["g_ln1"], p["b_ln1"])
    y = jnp.swapaxes(y, 1, 2)                                # b n d -> b d n
    y = _gelu_exact(y @ p["w_ntr1"].T + p["b_ntr1"])
    y = y @ p["w_ntr2"].T + p["b_ntr2"]
    y = jnp.swapaxes(y, 1, 2)                                # b d n -> b n d
    x = x + y
    x = _layernorm_ref(x, p["g_ad"][None], p["b_ad"][None])  # per-neighbor LN
    z = _gelu_exact(x @ p["w_nar1"].T + p["b_nar1"])
    z = z @ p["w_nar2"].T + p["b_nar2"]
    return x + z


if __name__ == "__main__":
    B = 4              # batch
    K_neighbor = 8     # N (neighbors)
    features = 32      # D
    feature_dim = 64   # nar FFN hidden
    K_dim = 16         # ntr FFN hidden

    key = jax.random.PRNGKey(0)
    kx, kp = jax.random.split(key)
    x = jax.random.normal(kx, (B, K_neighbor, features), jnp.float32)
    params = init_params(kp, features, K_neighbor, feature_dim, K_dim)

    out = nrn_block_adapter_forward(x, params)
    out = jax.block_until_ready(out)

    ref = reference_forward(x, params)
    np.testing.assert_allclose(np.asarray(out), np.asarray(ref), rtol=1e-4, atol=1e-4)

    print("KERNEL_OK")
</pallas_src>

<mosaic_0001>
module attributes {stable_mosaic.version = 11 : i64} {
  func.func @nrn_block_adapter_kernel(%arg0: i32, %arg1: memref<2x8x32xf32, #tpu.memory_space<vmem>>, %arg2: memref<1x1x32xf32, #tpu.memory_space<vmem>>, %arg3: memref<1x1x32xf32, #tpu.memory_space<vmem>>, %arg4: memref<16x8xf32, #tpu.memory_space<vmem>>, %arg5: memref<16x1xf32, #tpu.memory_space<vmem>>, %arg6: memref<8x16xf32, #tpu.memory_space<vmem>>, %arg7: memref<8x1xf32, #tpu.memory_space<vmem>>, %arg8: memref<8x32xf32, #tpu.memory_space<vmem>>, %arg9: memref<8x32xf32, #tpu.memory_space<vmem>>, %arg10: memref<32x64xf32, #tpu.memory_space<vmem>>, %arg11: memref<1x64xf32, #tpu.memory_space<vmem>>, %arg12: memref<64x32xf32, #tpu.memory_space<vmem>>, %arg13: memref<1x32xf32, #tpu.memory_space<vmem>>, %arg14: memref<2x8x32xf32, #tpu.memory_space<vmem>>) attributes {dimension_semantics = [#tpu.dimension_semantics<parallel>], iteration_bounds = array<i64: 2>, scalar_prefetch = 0 : i64, scratch_operands = 0 : i64, tpu.core_type = #tpu.core_type<tc>, window_params = [{transform_indices = @transform_0, window_bounds = array<i64: 2, 8, 32>}, {pipeline_mode = #tpu.pipeline_mode<synchronous>, transform_indices = @transform_1, window_bounds = array<i64: 1, 1, 32>}, {pipeline_mode = #tpu.pipeline_mode<synchronous>, transform_indices = @transform_2, window_bounds = array<i64: 1, 1, 32>}, {pipeline_mode = #tpu.pipeline_mode<synchronous>, transform_indices = @transform_3, window_bounds = array<i64: 16, 8>}, {pipeline_mode = #tpu.pipeline_mode<synchronous>, transform_indices = @transform_4, window_bounds = array<i64: 16, 1>}, {pipeline_mode = #tpu.pipeline_mode<synchronous>, transform_indices = @transform_5, window_bounds = array<i64: 8, 16>}, {pipeline_mode = #tpu.pipeline_mode<synchronous>, transform_indices = @transform_6, window_bounds = array<i64: 8, 1>}, {pipeline_mode = #tpu.pipeline_mode<synchronous>, transform_indices = @transform_7, window_bounds = array<i64: 8, 32>}, {pipeline_mode = #tpu.pipeline_mode<synchronous>, transform_indices = @transform_8, window_bounds = array<i64: 8, 32>}, {pipeline_mode = #tpu.pipeline_mode<synchronous>, transform_indices = @transform_9, window_bounds = array<i64: 32, 64>}, {pipeline_mode = #tpu.pipeline_mode<synchronous>, transform_indices = @transform_10, window_bounds = array<i64: 1, 64>}, {pipeline_mode = #tpu.pipeline_mode<synchronous>, transform_indices = @transform_11, window_bounds = array<i64: 64, 32>}, {pipeline_mode = #tpu.pipeline_mode<synchronous>, transform_indices = @transform_12, window_bounds = array<i64: 1, 32>}, {transform_indices = @transform_13, window_bounds = array<i64: 2, 8, 32>}]} {
    %c0 = arith.constant 0 : index
    %c0_0 = arith.constant 0 : index
    %c0_1 = arith.constant 0 : index
    %0 = vector.load %arg1[%c0, %c0_0, %c0_1] : memref<2x8x32xf32, #tpu.memory_space<vmem>>, vector<2x8x32xf32>
    %cst = arith.constant dense<0.000000e+00> : vector<2x8xf32>
    %1 = vector.multi_reduction <add>, %0, %cst [2] : vector<2x8x32xf32> to vector<2x8xf32>
    %2 = vector.shape_cast %1 : vector<2x8xf32> to vector<2x8x1xf32>
    %cst_2 = arith.constant 3.200000e+01 : f32
    %3 = vector.broadcast %cst_2 : f32 to vector<2x8x1xf32>
    %4 = arith.divf %2, %3 : vector<2x8x1xf32>
    %5 = vector.broadcast %4 : vector<2x8x1xf32> to vector<2x8x32xf32>
    %6 = arith.subf %0, %5 : vector<2x8x32xf32>
    %7 = arith.mulf %6, %6 : vector<2x8x32xf32>
    %cst_3 = arith.constant dense<0.000000e+00> : vector<2x8xf32>
    %8 = vector.multi_reduction <add>, %7, %cst_3 [2] : vector<2x8x32xf32> to vector<2x8xf32>
    %9 = vector.shape_cast %8 : vector<2x8xf32> to vector<2x8x1xf32>
    %cst_4 = arith.constant 3.200000e+01 : f32
    %10 = vector.broadcast %cst_4 : f32 to vector<2x8x1xf32>
    %11 = arith.divf %9, %10 : vector<2x8x1xf32>
    %12 = vector.broadcast %4 : vector<2x8x1xf32> to vector<2x8x32xf32>
    %13 = arith.subf %0, %12 : vector<2x8x32xf32>
    %cst_5 = arith.constant 9.99999974E-6 : f32
    %14 = vector.broadcast %cst_5 : f32 to vector<2x8x1xf32>
    %15 = arith.addf %11, %14 : vector<2x8x1xf32>
    %16 = math.rsqrt %15 : vector<2x8x1xf32>
    %17 = vector.broadcast %16 : vector<2x8x1xf32> to vector<2x8x32xf32>
    %18 = arith.mulf %13, %17 : vector<2x8x32xf32>
    %c0_6 = arith.constant 0 : index
    %c0_7 = arith.constant 0 : index
    %c0_8 = arith.constant 0 : index
    %19 = vector.load %arg2[%c0_6, %c0_7, %c0_8] : memref<1x1x32xf32, #tpu.memory_space<vmem>>, vector<1x1x32xf32>
    %20 = vector.broadcast %19 : vector<1x1x32xf32> to vector<2x8x32xf32>
    %21 = arith.mulf %18, %20 : vector<2x8x32xf32>
    %c0_9 = arith.constant 0 : index
    %c0_10 = arith.constant 0 : index
    %c0_11 = arith.constant 0 : index
    %22 = vector.load %arg3[%c0_9, %c0_10, %c0_11] : memref<1x1x32xf32, #tpu.memory_space<vmem>>, vector<1x1x32xf32>
    %23 = vector.broadcast %22 : vector<1x1x32xf32> to vector<2x8x32xf32>
    %24 = arith.addf %21, %23 : vector<2x8x32xf32>
    %c0_12 = arith.constant 0 : index
    %c0_13 = arith.constant 0 : index
    %25 = vector.load %arg4[%c0_12, %c0_13] : memref<16x8xf32, #tpu.memory_space<vmem>>, vector<16x8xf32>
    %26 = vector.shape_cast %25 : vector<16x8xf32> to vector<1x16x8xf32>
    %27 = vector.shape_cast %26 : vector<1x16x8xf32> to vector<1x16x8xf32>
    %28 = vector.broadcast %27 : vector<1x16x8xf32> to vector<2x16x8xf32>
    "tpu.trace_start"() <{level = 10 : i32, message = "bkn,bnd->bkd"}> : () -> ()
    %cst_14 = arith.constant dense<0.000000e+00> : vector<2x16x32xf32>
    %29 = tpu.matmul %28, %24, %cst_14 {dimension_numbers = #tpu.dot_dimension_numbers<[2], [1], [1], [2], [0, 0, 0, 1, 1, 2], [0], [0]>} : vector<2x16x8xf32>, vector<2x8x32xf32>, vector<2x16x32xf32> -> vector<2x16x32xf32>
    "tpu.trace_stop"() : () -> ()
    %c0_15 = arith.constant 0 : index
    %c0_16 = arith.constant 0 : index
    %30 = vector.load %arg5[%c0_15, %c0_16] : memref<16x1xf32, #tpu.memory_space<vmem>>, vector<16x1xf32>
    %31 = vector.shape_cast %30 : vector<16x1xf32> to vector<1x16x1xf32>
    %32 = vector.broadcast %31 : vector<1x16x1xf32> to vector<2x16x32xf32>
    %33 = arith.addf %29, %32 : vector<2x16x32xf32>
    %cst_17 = arith.constant 5.000000e-01 : f32
    %34 = vector.broadcast %cst_17 : f32 to vector<2x16x32xf32>
    %35 = arith.mulf %34, %33 : vector<2x16x32xf32>
    %cst_18 = arith.constant 0.707106769 : f32
    %36 = vector.broadcast %cst_18 : f32 to vector<2x16x32xf32>
    %37 = arith.mulf %33, %36 : vector<2x16x32xf32>
    %38 = math.erf %37 : vector<2x16x32xf32>
    %cst_19 = arith.constant 1.000000e+00 : f32
    %39 = vector.broadcast %cst_19 : f32 to vector<2x16x32xf32>
    %40 = arith.addf %39, %38 : vector<2x16x32xf32>
    %41 = arith.mulf %35, %40 : vector<2x16x32xf32>
    %c0_20 = arith.constant 0 : index
    %c0_21 = arith.constant 0 : index
    %42 = vector.load %arg6[%c0_20, %c0_21] : memref<8x16xf32, #tpu.memory_space<vmem>>, vector<8x16xf32>
    %43 = vector.shape_cast %42 : vector<8x16xf32> to vector<1x8x16xf32>
    %44 = vector.shape_cast %43 : vector<1x8x16xf32> to vector<1x8x16xf32>
    %45 = vector.broadcast %44 : vector<1x8x16xf32> to vector<2x8x16xf32>
    "tpu.trace_start"() <{level = 10 : i32, message = "bnk,bkd->bnd"}> : () -> ()
    %cst_22 = arith.constant dense<0.000000e+00> : vector<2x8x32xf32>
    %46 = tpu.matmul %45, %41, %cst_22 {dimension_numbers = #tpu.dot_dimension_numbers<[2], [1], [1], [2], [0, 0, 0, 1, 1, 2], [0], [0]>} : vector<2x8x16xf32>, vector<2x16x32xf32>, vector<2x8x32xf32> -> vector<2x8x32xf32>
    "tpu.trace_stop"() : () -> ()
    %c0_23 = arith.constant 0 : index
    %c0_24 = arith.constant 0 : index
    %47 = vector.load %arg7[%c0_23, %c0_24] : memref<8x1xf32, #tpu.memory_space<vmem>>, vector<8x1xf32>
    %48 = vector.shape_cast %47 : vector<8x1xf32> to vector<1x8x1xf32>
    %49 = vector.broadcast %48 : vector<1x8x1xf32> to vector<2x8x32xf32>
    %50 = arith.addf %46, %49 : vector<2x8x32xf32>
    %51 = arith.addf %0, %50 : vector<2x8x32xf32>
    %cst_25 = arith.constant dense<0.000000e+00> : vector<2x8xf32>
    %52 = vector.multi_reduction <add>, %51, %cst_25 [2] : vector<2x8x32xf32> to vector<2x8xf32>
    %53 = vector.shape_cast %52 : vector<2x8xf32> to vector<2x8x1xf32>
    %cst_26 = arith.constant 3.200000e+01 : f32
    %54 = vector.broadcast %cst_26 : f32 to vector<2x8x1xf32>
    %55 = arith.divf %53, %54 : vector<2x8x1xf32>
    %56 = vector.broadcast %55 : vector<2x8x1xf32> to vector<2x8x32xf32>
    %57 = arith.subf %51, %56 : vector<2x8x32xf32>
    %58 = arith.mulf %57, %57 : vector<2x8x32xf32>
    %cst_27 = arith.constant dense<0.000000e+00> : vector<2x8xf32>
    %59 = vector.multi_reduction <add>, %58, %cst_27 [2] : vector<2x8x32xf32> to vector<2x8xf32>
    %60 = vector.shape_cast %59 : vector<2x8xf32> to vector<2x8x1xf32>
    %cst_28 = arith.constant 3.200000e+01 : f32
    %61 = vector.broadcast %cst_28 : f32 to vector<2x8x1xf32>
    %62 = arith.divf %60, %61 : vector<2x8x1xf32>
    %63 = vector.broadcast %55 : vector<2x8x1xf32> to vector<2x8x32xf32>
    %64 = arith.subf %51, %63 : vector<2x8x32xf32>
    %cst_29 = arith.constant 9.99999974E-6 : f32
    %65 = vector.broadcast %cst_29 : f32 to vector<2x8x1xf32>
    %66 = arith.addf %62, %65 : vector<2x8x1xf32>
    %67 = math.rsqrt %66 : vector<2x8x1xf32>
    %68 = vector.broadcast %67 : vector<2x8x1xf32> to vector<2x8x32xf32>
    %69 = arith.mulf %64, %68 : vector<2x8x32xf32>
    %c0_30 = arith.constant 0 : index
    %c0_31 = arith.constant 0 : index
    %70 = vector.load %arg8[%c0_30, %c0_31] : memref<8x32xf32, #tpu.memory_space<vmem>>, vector<8x32xf32>
    %71 = vector.shape_cast %70 : vector<8x32xf32> to vector<1x8x32xf32>
    %72 = vector.broadcast %71 : vector<1x8x32xf32> to vector<2x8x32xf32>
    %73 = arith.mulf %69, %72 : vector<2x8x32xf32>
    %c0_32 = arith.constant 0 : index
    %c0_33 = arith.constant 0 : index
    %74 = vector.load %arg9[%c0_32, %c0_33] : memref<8x32xf32, #tpu.memory_space<vmem>>, vector<8x32xf32>
    %75 = vector.shape_cast %74 : vector<8x32xf32> to vector<1x8x32xf32>
    %76 = vector.broadcast %75 : vector<1x8x32xf32> to vector<2x8x32xf32>
    %77 = arith.addf %73, %76 : vector<2x8x32xf32>
    %78 = vector.shape_cast %77 : vector<2x8x32xf32> to vector<16x32xf32>
    %c0_34 = arith.constant 0 : index
    %c0_35 = arith.constant 0 : index
    %79 = vector.load %arg10[%c0_34, %c0_35] : memref<32x64xf32, #tpu.memory_space<vmem>>, vector<32x64xf32>
    %cst_36 = arith.constant dense<0.000000e+00> : vector<16x64xf32>
    %80 = tpu.matmul %78, %79, %cst_36 {dimension_numbers = #tpu.dot_dimension_numbers<[1], [0], [0], [1], [0, 0, 1, 1], [], []>} : vector<16x32xf32>, vector<32x64xf32>, vector<16x64xf32> -> vector<16x64xf32>
    %c0_37 = arith.constant 0 : index
    %c0_38 = arith.constant 0 : index
    %81 = vector.load %arg11[%c0_37, %c0_38] : memref<1x64xf32, #tpu.memory_space<vmem>>, vector<1x64xf32>
    %82 = vector.broadcast %81 : vector<1x64xf32> to vector<16x64xf32>
    %83 = arith.addf %80, %82 : vector<16x64xf32>
    %cst_39 = arith.constant 5.000000e-01 : f32
    %84 = vector.broadcast %cst_39 : f32 to vector<16x64xf32>
    %85 = arith.mulf %84, %83 : vector<16x64xf32>
    %cst_40 = arith.constant 0.707106769 : f32
    %86 = vector.broadcast %cst_40 : f32 to vector<16x64xf32>
    %87 = arith.mulf %83, %86 : vector<16x64xf32>
    %88 = math.erf %87 : vector<16x64xf32>
    %cst_41 = arith.constant 1.000000e+00 : f32
    %89 = vector.broadcast %cst_41 : f32 to vector<16x64xf32>
    %90 = arith.addf %89, %88 : vector<16x64xf32>
    %91 = arith.mulf %85, %90 : vector<16x64xf32>
    %c0_42 = arith.constant 0 : index
    %c0_43 = arith.constant 0 : index
    %92 = vector.load %arg12[%c0_42, %c0_43] : memref<64x32xf32, #tpu.memory_space<vmem>>, vector<64x32xf32>
    %cst_44 = arith.constant dense<0.000000e+00> : vector<16x32xf32>
    %93 = tpu.matmul %91, %92, %cst_44 {dimension_numbers = #tpu.dot_dimension_numbers<[1], [0], [0], [1], [0, 0, 1, 1], [], []>} : vector<16x64xf32>, vector<64x32xf32>, vector<16x32xf32> -> vector<16x32xf32>
    %c0_45 = arith.constant 0 : index
    %c0_46 = arith.constant 0 : index
    %94 = vector.load %arg13[%c0_45, %c0_46] : memref<1x32xf32, #tpu.memory_space<vmem>>, vector<1x32xf32>
    %95 = vector.broadcast %94 : vector<1x32xf32> to vector<16x32xf32>
    %96 = arith.addf %93, %95 : vector<16x32xf32>
    %97 = arith.addf %78, %96 : vector<16x32xf32>
    %98 = vector.shape_cast %97 : vector<16x32xf32> to vector<2x8x32xf32>
    %c0_47 = arith.constant 0 : index
    %c0_48 = arith.constant 0 : index
    %c0_49 = arith.constant 0 : index
    %99 = vector.load %arg14[%c0_47, %c0_48, %c0_49] : memref<2x8x32xf32, #tpu.memory_space<vmem>>, vector<2x8x32xf32>
    tpu.vector_store %arg14[%c0_47, %c0_48, %c0_49], %98 {strides = array<i32>} : memref<2x8x32xf32, #tpu.memory_space<vmem>>, vector<2x8x32xf32>,
    return
  }
  func.func @transform_0(%arg0: i32) -> (i32, i32, i32) {
    %c0_i32 = arith.constant 0 : i32
    %c0_i32_0 = arith.constant 0 : i32
    %c0_i32_1 = arith.constant 0 : i32
    return %arg0, %c0_i32, %c0_i32_0 : i32, i32, i32
  }
  func.func @transform_1(%arg0: i32) -> (i32, i32, i32) {
    %c0_i32 = arith.constant 0 : i32
    %c0_i32_0 = arith.constant 0 : i32
    %c0_i32_1 = arith.constant 0 : i32
    %c0_i32_2 = arith.constant 0 : i32
    return %c0_i32, %c0_i32_0, %c0_i32_1 : i32, i32, i32
  }
  func.func @transform_2(%arg0: i32) -> (i32, i32, i32) {
    %c0_i32 = arith.constant 0 : i32
    %c0_i32_0 = arith.constant 0 : i32
    %c0_i32_1 = arith.constant 0 : i32
    %c0_i32_2 = arith.constant 0 : i32
    return %c0_i32, %c0_i32_0, %c0_i32_1 : i32, i32, i32
  }
  func.func @transform_3(%arg0: i32) -> (i32, i32) {
    %c0_i32 = arith.constant 0 : i32
    %c0_i32_0 = arith.constant 0 : i32
    %c0_i32_1 = arith.constant 0 : i32
    return %c0_i32, %c0_i32_0 : i32, i32
  }
  func.func @transform_4(%arg0: i32) -> (i32, i32) {
    %c0_i32 = arith.constant 0 : i32
    %c0_i32_0 = arith.constant 0 : i32
    %c0_i32_1 = arith.constant 0 : i32
    return %c0_i32, %c0_i32_0 : i32, i32
  }
  func.func @transform_5(%arg0: i32) -> (i32, i32) {
    %c0_i32 = arith.constant 0 : i32
    %c0_i32_0 = arith.constant 0 : i32
    %c0_i32_1 = arith.constant 0 : i32
    return %c0_i32, %c0_i32_0 : i32, i32
  }
  func.func @transform_6(%arg0: i32) -> (i32, i32) {
    %c0_i32 = arith.constant 0 : i32
    %c0_i32_0 = arith.constant 0 : i32
    %c0_i32_1 = arith.constant 0 : i32
    return %c0_i32, %c0_i32_0 : i32, i32
  }
  func.func @transform_7(%arg0: i32) -> (i32, i32) {
    %c0_i32 = arith.constant 0 : i32
    %c0_i32_0 = arith.constant 0 : i32
    %c0_i32_1 = arith.constant 0 : i32
    return %c0_i32, %c0_i32_0 : i32, i32
  }
  func.func @transform_8(%arg0: i32) -> (i32, i32) {
    %c0_i32 = arith.constant 0 : i32
    %c0_i32_0 = arith.constant 0 : i32
    %c0_i32_1 = arith.constant 0 : i32
    return %c0_i32, %c0_i32_0 : i32, i32
  }
  func.func @transform_9(%arg0: i32) -> (i32, i32) {
    %c0_i32 = arith.constant 0 : i32
    %c0_i32_0 = arith.constant 0 : i32
    %c0_i32_1 = arith.constant 0 : i32
    return %c0_i32, %c0_i32_0 : i32, i32
  }
  func.func @transform_10(%arg0: i32) -> (i32, i32) {
    %c0_i32 = arith.constant 0 : i32
    %c0_i32_0 = arith.constant 0 : i32
    %c0_i32_1 = arith.constant 0 : i32
    return %c0_i32, %c0_i32_0 : i32, i32
  }
  func.func @transform_11(%arg0: i32) -> (i32, i32) {
    %c0_i32 = arith.constant 0 : i32
    %c0_i32_0 = arith.constant 0 : i32
    %c0_i32_1 = arith.constant 0 : i32
    return %c0_i32, %c0_i32_0 : i32, i32
  }
  func.func @transform_12(%arg0: i32) -> (i32, i32) {
    %c0_i32 = arith.constant 0 : i32
    %c0_i32_0 = arith.constant 0 : i32
    %c0_i32_1 = arith.constant 0 : i32
    return %c0_i32, %c0_i32_0 : i32, i32
  }
  func.func @transform_13(%arg0: i32) -> (i32, i32, i32) {
    %c0_i32 = arith.constant 0 : i32
    %c0_i32_0 = arith.constant 0 : i32
    %c0_i32_1 = arith.constant 0 : i32
    return %arg0, %c0_i32, %c0_i32_0 : i32, i32, i32
  }
}

</mosaic_0001>

<llo_original>
// kernel: nrn_block_adapter_forward.1
$region0: #{nrn_block_adapter_forward.1}
  #allocation0 [shape = 'u32[]', space=smem, size = 0x4, offset = 0x4, fixed_abs, tag = 'smem constant byte address 0x4 - core index']
  #allocation1 [shape = 'u32[72,128]{1,0:T(1,128)}', space=vmem, size = 0x9000, scoped, tag = 'internal scratch']
  %s0 = inlined_call_operand.vmem [shape: f32[4,8,32], index: 0, kind: input, shape index: {}]
  %s1 = inlined_call_operand.vmem [shape: f32[1,1,32], index: 1, kind: input, shape index: {}]
  %s2 = inlined_call_operand.vmem [shape: f32[1,1,32], index: 2, kind: input, shape index: {}]
  %s3 = inlined_call_operand.vmem [shape: f32[16,8], index: 3, kind: input, shape index: {}]
  %s4 = inlined_call_operand.vmem [shape: f32[16,1], index: 4, kind: input, shape index: {}]
  %s5 = inlined_call_operand.vmem [shape: f32[8,16], index: 5, kind: input, shape index: {}]
  %s6 = inlined_call_operand.vmem [shape: f32[8,1], index: 6, kind: input, shape index: {}]
  %s7 = inlined_call_operand.vmem [shape: f32[8,32], index: 7, kind: input, shape index: {}]
  %s8 = inlined_call_operand.vmem [shape: f32[8,32], index: 8, kind: input, shape index: {}]
  %s9 = inlined_call_operand.vmem [shape: f32[32,64], index: 9, kind: input, shape index: {}]
  %s10 = inlined_call_operand.vmem [shape: f32[1,64], index: 10, kind: input, shape index: {}]
  %s11 = inlined_call_operand.vmem [shape: f32[64,32], index: 11, kind: input, shape index: {}]
  %s12 = inlined_call_operand.vmem [shape: f32[1,32], index: 12, kind: input, shape index: {}]
  %s13 = inlined_call_operand.hbm [shape: f32[4,8,32], index: 13, kind: output, shape index: {}]
  %s14 = sld [smem:[#allocation0]]
  $region85: #{nrn_block_adapter_forward.1} parent=0
    _
  %s16 = ssub.s32 1, %s14
  %s17 = scalar_select 0, %s16, %s14
  $region1: #{nrn_block_adapter_forward.1} parent=0
    #allocation2 [shape = 'u8[16384]{0}', space=vmem, size = 0x4000, scoped, tag = 'output window, operand 0']
    #allocation3 [shape = 's32[2]{0}', space=sflag, size = 0x8, scoped, tag = 'scoped memory for nrn_block_adapter_forward.1']
    %18 = vsyncpa [#allocation3], 0
    %s19 = scalar_lea.sflag [#allocation3], 1
    %20 = vsyncpa %s19, 0
    loop: start=0, step=1, limit=4
    $region2: #{nrn_block_adapter_forward.1} parent=1 // loop_pre_header
      _
    $region3: #{nrn_block_adapter_forward.1} parent=1 // loop_header
      %s22 = sphi 0, %s26
      %p23 = scmp.ge.s32.totalorder %s22, 4
      %s32 = sphi 0, %s34
      %s35 = sphi 0, %s32
      %s36 = sphi 0, %s35
      %s52 = sphi 0, %s36
      %s56 = sphi 0, %s56
      %s58 = sphi 0, %s56
      %s59 = sphi 0, %s58
      %s73 = sphi 0, %s59
      %s77 = sphi 0, %s77
      %s79 = sphi 0, %s77
      %s80 = sphi 0, %s79
      %s94 = sphi 0, %s80
      %s98 = sphi 0, %s98
      %s100 = sphi 0, %s98
      %s101 = sphi 0, %s100
      %s115 = sphi 0, %s101
      %s119 = sphi 0, %s119
      %s121 = sphi 0, %s119
      %s122 = sphi 0, %s121
      %s136 = sphi 0, %s122
      %s140 = sphi 0, %s140
      %s142 = sphi 0, %s140
      %s143 = sphi 0, %s142
      %s157 = sphi 0, %s143
      %s161 = sphi 0, %s161
      %s163 = sphi 0, %s161
      %s164 = sphi 0, %s163
      %s178 = sphi 0, %s164
      %s182 = sphi 0, %s182
      %s184 = sphi 0, %s182
      %s185 = sphi 0, %s184
      %s199 = sphi 0, %s185
      %s203 = sphi 0, %s203
      %s205 = sphi 0, %s203
      %s206 = sphi 0, %s205
      %s220 = sphi 0, %s206
      %s224 = sphi 0, %s224
      %s226 = sphi 0, %s224
      %s227 = sphi 0, %s226
      %s241 = sphi 0, %s227
      %s245 = sphi 0, %s245
      %s247 = sphi 0, %s245
      %s248 = sphi 0, %s247
      %s262 = sphi 0, %s248
      %s266 = sphi 0, %s266
      %s268 = sphi 0, %s266
      %s269 = sphi 0, %s268
      %s283 = sphi 0, %s269
      %s287 = sphi 0, %s287
      %s289 = sphi 0, %s287
      %s290 = sphi 0, %s289
      %s304 = sphi 0, %s290
      %s310 = sphi 0, %s312
      %s313 = sphi 0, %s310
      %s314 = sphi 0, %s313
      %s330 = sphi 0, %s314
    $region4: #{nrn_block_adapter_forward.1} parent=1 // loop_header_branch
      %25 = sbr.rel (%p23) target = $region8
    $region5: #{nrn_block_adapter_forward.1} parent=1 // loop_body
      %s27 = ssub.s32 %s22, 1
      %s28 = ssub.s32 %s22, 2
      %s29 = sadd.s32 %s22, 1
      %s30 = ssub.s32 %s22, %s29
      %p31 = scmp.eq.s32.totalorder %s30, 0
      %s33 = sadd.s32 %s32, 1
      %s34 = scalar_select %p31, %s32, %s33
      %p37 = pneg %p31
      %p38 = scmp.eq.s32.totalorder %s22, 1
      %p39 = por %p37, %p38
      %p40 = scmp.ne.s32.totalorder %s32, %s35
      %p41 = scmp.eq.s32.totalorder %s22, 0
      %p42 = por %p40, %p41
      %p43 = scmp.ne.s32.totalorder %s32, %s35
      %p44 = scmp.eq.s32.totalorder %s27, 1
      %p45 = por %p43, %p44
      %p46 = scmp.ne.s32.totalorder %s35, %s36
      %p47 = scmp.eq.s32.totalorder %s27, 0
      %p48 = por %p46, %p47
      %p49 = scmp.ne.s32.totalorder %s35, %s36
      %p50 = scmp.eq.s32.totalorder %s28, 1
      %p51 = por %p49, %p50
      %p53 = scmp.ne.s32.totalorder %s36, %s52
      %p54 = scmp.eq.s32.totalorder %s28, 0
      %p55 = por %p53, %p54
      %s57 = sadd.s32 %s56, 1
      %p60 = scmp.eq.s32.totalorder %s22, 1
      %p61 = scmp.ne.s32.totalorder %s56, %s58
      %p62 = scmp.eq.s32.totalorder %s22, 0
      %p63 = por %p61, %p62
      %p64 = scmp.ne.s32.totalorder %s56, %s58
      %p65 = scmp.eq.s32.totalorder %s27, 1
      %p66 = por %p64, %p65
      %p67 = scmp.ne.s32.totalorder %s58, %s59
      %p68 = scmp.eq.s32.totalorder %s27, 0
      %p69 = por %p67, %p68
      %p70 = scmp.ne.s32.totalorder %s58, %s59
      %p71 = scmp.eq.s32.totalorder %s28, 1
      %p72 = por %p70, %p71
      %p74 = scmp.ne.s32.totalorder %s59, %s73
      %p75 = scmp.eq.s32.totalorder %s28, 0
      %p76 = por %p74, %p75
      %s78 = sadd.s32 %s77, 1
      %p81 = scmp.eq.s32.totalorder %s22, 1
      %p82 = scmp.ne.s32.totalorder %s77, %s79
      %p83 = scmp.eq.s32.totalorder %s22, 0
      %p84 = por %p82, %p83
      %p85 = scmp.ne.s32.totalorder %s77, %s79
      %p86 = scmp.eq.s32.totalorder %s27, 1
      %p87 = por %p85, %p86
      %p88 = scmp.ne.s32.totalorder %s79, %s80
      %p89 = scmp.eq.s32.totalorder %s27, 0
      %p90 = por %p88, %p89
      %p91 = scmp.ne.s32.totalorder %s79, %s80
      %p92 = scmp.eq.s32.totalorder %s28, 1
      %p93 = por %p91, %p92
      %p95 = scmp.ne.s32.totalorder %s80, %s94
      %p96 = scmp.eq.s32.totalorder %s28, 0
      %p97 = por %p95, %p96
      %s99 = sadd.s32 %s98, 1
      %p102 = scmp.eq.s32.totalorder %s22, 1
      %p103 = scmp.ne.s32.totalorder %s98, %s100
      %p104 = scmp.eq.s32.totalorder %s22, 0
      %p105 = por %p103, %p104
      %p106 = scmp.ne.s32.totalorder %s98, %s100
      %p107 = scmp.eq.s32.totalorder %s27, 1
      %p108 = por %p106, %p107
      %p109 = scmp.ne.s32.totalorder %s100, %s101
      %p110 = scmp.eq.s32.totalorder %s27, 0
      %p111 = por %p109, %p110
      %p112 = scmp.ne.s32.totalorder %s100, %s101
      %p113 = scmp.eq.s32.totalorder %s28, 1
      %p114 = por %p112, %p113
      %p116 = scmp.ne.s32.totalorder %s101, %s115
      %p117 = scmp.eq.s32.totalorder %s28, 0
      %p118 = por %p116, %p117
      %s120 = sadd.s32 %s119, 1
      %p123 = scmp.eq.s32.totalorder %s22, 1
      %p124 = scmp.ne.s32.totalorder %s119, %s121
      %p125 = scmp.eq.s32.totalorder %s22, 0
      %p126 = por %p124, %p125
      %p127 = scmp.ne.s32.totalorder %s119, %s121
      %p128 = scmp.eq.s32.totalorder %s27, 1
      %p129 = por %p127, %p128
      %p130 = scmp.ne.s32.totalorder %s121, %s122
      %p131 = scmp.eq.s32.totalorder %s27, 0
      %p132 = por %p130, %p131
      %p133 = scmp.ne.s32.totalorder %s121, %s122
      %p134 = scmp.eq.s32.totalorder %s28, 1
      %p135 = por %p133, %p134
      %p137 = scmp.ne.s32.totalorder %s122, %s136
      %p138 = scmp.eq.s32.totalorder %s28, 0
      %p139 = por %p137, %p138
      %s141 = sadd.s32 %s140, 1
      %p144 = scmp.eq.s32.totalorder %s22, 1
      %p145 = scmp.ne.s32.totalorder %s140, %s142
      %p146 = scmp.eq.s32.totalorder %s22, 0
      %p147 = por %p145, %p146
      %p148 = scmp.ne.s32.totalorder %s140, %s142
      %p149 = scmp.eq.s32.totalorder %s27, 1
      %p150 = por %p148, %p149
      %p151 = scmp.ne.s32.totalorder %s142, %s143
      %p152 = scmp.eq.s32.totalorder %s27, 0
      %p153 = por %p151, %p152
      %p154 = scmp.ne.s32.totalorder %s142, %s143
      %p155 = scmp.eq.s32.totalorder %s28, 1
      %p156 = por %p154, %p155
      %p158 = scmp.ne.s32.totalorder %s143, %s157
      %p159 = scmp.eq.s32.totalorder %s28, 0
      %p160 = por %p158, %p159
      %s162 = sadd.s32 %s161, 1
      %p165 = scmp.eq.s32.totalorder %s22, 1
      %p166 = scmp.ne.s32.totalorder %s161, %s163
      %p167 = scmp.eq.s32.totalorder %s22, 0
      %p168 = por %p166, %p167
      %p169 = scmp.ne.s32.totalorder %s161, %s163
      %p170 = scmp.eq.s32.totalorder %s27, 1
      %p171 = por %p169, %p170
      %p172 = scmp.ne.s32.totalorder %s163, %s164
      %p173 = scmp.eq.s32.totalorder %s27, 0
      %p174 = por %p172, %p173
      %p175 = scmp.ne.s32.totalorder %s163, %s164
      %p176 = scmp.eq.s32.totalorder %s28, 1
      %p177 = por %p175, %p176
      %p179 = scmp.ne.s32.totalorder %s164, %s178
      %p180 = scmp.eq.s32.totalorder %s28, 0
      %p181 = por %p179, %p180
      %s183 = sadd.s32 %s182, 1
      %p186 = scmp.eq.s32.totalorder %s22, 1
      %p187 = scmp.ne.s32.totalorder %s182, %s184
      %p188 = scmp.eq.s32.totalorder %s22, 0
      %p189 = por %p187, %p188
      %p190 = scmp.ne.s32.totalorder %s182, %s184
      %p191 = scmp.eq.s32.totalorder %s27, 1
      %p192 = por %p190, %p191
      %p193 = scmp.ne.s32.totalorder %s184, %s185
      %p194 = scmp.eq.s32.totalorder %s27, 0
      %p195 = por %p193, %p194
      %p196 = scmp.ne.s32.totalorder %s184, %s185
      %p197 = scmp.eq.s32.totalorder %s28, 1
      %p198 = por %p196, %p197
      %p200 = scmp.ne.s32.totalorder %s185, %s199
      %p201 = scmp.eq.s32.totalorder %s28, 0
      %p202 = por %p200, %p201
      %s204 = sadd.s32 %s203, 1
      %p207 = scmp.eq.s32.totalorder %s22, 1
      %p208 = scmp.ne.s32.totalorder %s203, %s205
      %p209 = scmp.eq.s32.totalorder %s22, 0
      %p210 = por %p208, %p209
      %p211 = scmp.ne.s32.totalorder %s203, %s205
      %p212 = scmp.eq.s32.totalorder %s27, 1
      %p213 = por %p211, %p212
      %p214 = scmp.ne.s32.totalorder %s205, %s206
      %p215 = scmp.eq.s32.totalorder %s27, 0
      %p216 = por %p214, %p215
      %p217 = scmp.ne.s32.totalorder %s205, %s206
      %p218 = scmp.eq.s32.totalorder %s28, 1
      %p219 = por %p217, %p218
      %p221 = scmp.ne.s32.totalorder %s206, %s220
      %p222 = scmp.eq.s32.totalorder %s28, 0
      %p223 = por %p221, %p222
      %s225 = sadd.s32 %s224, 1
      %p228 = scmp.eq.s32.totalorder %s22, 1
      %p229 = scmp.ne.s32.totalorder %s224, %s226
      %p230 = scmp.eq.s32.totalorder %s22, 0
      %p231 = por %p229, %p230
      %p232 = scmp.ne.s32.totalorder %s224, %s226
      %p233 = scmp.eq.s32.totalorder %s27, 1
      %p234 = por %p232, %p233
      %p235 = scmp.ne.s32.totalorder %s226, %s227
      %p236 = scmp.eq.s32.totalorder %s27, 0
      %p237 = por %p235, %p236
      %p238 = scmp.ne.s32.totalorder %s226, %s227
      %p239 = scmp.eq.s32.totalorder %s28, 1
      %p240 = por %p238, %p239
      %p242 = scmp.ne.s32.totalorder %s227, %s241
      %p243 = scmp.eq.s32.totalorder %s28, 0
      %p244 = por %p242, %p243
      %s246 = sadd.s32 %s245, 1
      %p249 = scmp.eq.s32.totalorder %s22, 1
      %p250 = scmp.ne.s32.totalorder %s245, %s247
      %p251 = scmp.eq.s32.totalorder %s22, 0
      %p252 = por %p250, %p251
      %p253 = scmp.ne.s32.totalorder %s245, %s247
      %p254 = scmp.eq.s32.totalorder %s27, 1
      %p255 = por %p253, %p254
      %p256 = scmp.ne.s32.totalorder %s247, %s248
      %p257 = scmp.eq.s32.totalorder %s27, 0
      %p258 = por %p256, %p257
      %p259 = scmp.ne.s32.totalorder %s247, %s248
      %p260 = scmp.eq.s32.totalorder %s28, 1
      %p261 = por %p259, %p260
      %p263 = scmp.ne.s32.totalorder %s248, %s262
      %p264 = scmp.eq.s32.totalorder %s28, 0
      %p265 = por %p263, %p264
      %s267 = sadd.s32 %s266, 1
      %p270 = scmp.eq.s32.totalorder %s22, 1
      %p271 = scmp.ne.s32.totalorder %s266, %s268
      %p272 = scmp.eq.s32.totalorder %s22, 0
      %p273 = por %p271, %p272
      %p274 = scmp.ne.s32.totalorder %s266, %s268
      %p275 = scmp.eq.s32.totalorder %s27, 1
      %p276 = por %p274, %p275
      %p277 = scmp.ne.s32.totalorder %s268, %s269
      %p278 = scmp.eq.s32.totalorder %s27, 0
      %p279 = por %p277, %p278
      %p280 = scmp.ne.s32.totalorder %s268, %s269
      %p281 = scmp.eq.s32.totalorder %s28, 1
      %p282 = por %p280, %p281
      %p284 = scmp.ne.s32.totalorder %s269, %s283
      %p285 = scmp.eq.s32.totalorder %s28, 0
      %p286 = por %p284, %p285
      %s288 = sadd.s32 %s287, 1
      %p291 = scmp.eq.s32.totalorder %s22, 1
      %p292 = scmp.ne.s32.totalorder %s287, %s289
      %p293 = scmp.eq.s32.totalorder %s22, 0
      %p294 = por %p292, %p293
      %p295 = scmp.ne.s32.totalorder %s287, %s289
      %p296 = scmp.eq.s32.totalorder %s27, 1
      %p297 = por %p295, %p296
      %p298 = scmp.ne.s32.totalorder %s289, %s290
      %p299 = scmp.eq.s32.totalorder %s27, 0
      %p300 = por %p298, %p299
      %p301 = scmp.ne.s32.totalorder %s289, %s290
      %p302 = scmp.eq.s32.totalorder %s28, 1
      %p303 = por %p301, %p302
      %p305 = scmp.ne.s32.totalorder %s290, %s304
      %p306 = scmp.eq.s32.totalorder %s28, 0
      %p307 = por %p305, %p306
      %s308 = ssub.s32 %s22, %s29
      %p309 = scmp.eq.s32.totalorder %s308, 0
      %s311 = sadd.s32 %s310, 1
      %s312 = scalar_select %p309, %s310, %s311
      %p315 = pneg %p309
      %p316 = scmp.eq.s32.totalorder %s22, 1
      %p317 = por %p315, %p316
      %p318 = scmp.ne.s32.totalorder %s310, %s313
      %p319 = scmp.eq.s32.totalorder %s22, 0
      %p320 = por %p318, %p319
      %p321 = scmp.ne.s32.totalorder %s310, %s313
      %p322 = scmp.eq.s32.totalorder %s27, 1
      %p323 = por %p321, %p322
      %p324 = scmp.ne.s32.totalorder %s313, %s314
      %p325 = scmp.eq.s32.totalorder %s27, 0
      %p326 = por %p324, %p325
      %p327 = scmp.ne.s32.totalorder %s313, %s314
      %p328 = scmp.eq.s32.totalorder %s28, 1
      %p329 = por %p327, %p328
      %p331 = scmp.ne.s32.totalorder %s314, %s330
      %p332 = scmp.eq.s32.totalorder %s28, 0
      %p333 = por %p331, %p332
      %p334 = scmp.le.s32.totalorder 1, %s22
      %p335 = scmp.lt.s32.totalorder %s22, 3
      %p336 = pnand %p334, %p335
      %p337 = pneg %p336
      // Predicated region
      $region9: #{nrn_block_adapter_forward.1} parent=5 // pred_check
        _
      $region10: #{nrn_block_adapter_forward.1} parent=5 // pred_check_branch
        %339 = sbr.rel (%p336) target = $region12
      $region11: #{nrn_block_adapter_forward.1} parent=5 // pred_region
        %s340 = ssub.s32 %s22, 1
        // Predicated region
        $region13: #{nrn_block_adapter_forward.1} parent=11 // pred_check
          %p341 = pneg %p69
        $region14: #{nrn_block_adapter_forward.1} parent=11 // pred_check_branch
          %343 = sbr.rel (%p341) target = $region16
        $region15: #{nrn_block_adapter_forward.1} parent=11 // pred_region
          _
        $region16: #{nrn_block_adapter_forward.1} parent=11 // pred_fallthru
          _
        // Predicated region
        $region17: #{nrn_block_adapter_forward.1} parent=11 // pred_check
          %p344 = pneg %p90
        $region18: #{nrn_block_adapter_forward.1} parent=11 // pred_check_branch
          %346 = sbr.rel (%p344) target = $region20
        $region19: #{nrn_block_adapter_forward.1} parent=11 // pred_region
          _
        $region20: #{nrn_block_adapter_forward.1} parent=11 // pred_fallthru
          _
        // Predicated region
        $region21: #{nrn_block_adapter_forward.1} parent=11 // pred_check
          %p347 = pneg %p111
        $region22: #{nrn_block_adapter_forward.1} parent=11 // pred_check_branch
          %349 = sbr.rel (%p347) target = $region24
        $region23: #{nrn_block_adapter_forward.1} parent=11 // pred_region
          _
        $region24: #{nrn_block_adapter_forward.1} parent=11 // pred_fallthru
          _
        // Predicated region
        $region25: #{nrn_block_adapter_forward.1} parent=11 // pred_check
          %p350 = pneg %p132
        $region26: #{nrn_block_adapter_forward.1} parent=11 // pred_check_branch
          %352 = sbr.rel (%p350) target = $region28
        $region27: #{nrn_block_adapter_forward.1} parent=11 // pred_region
          _
        $region28: #{nrn_block_adapter_forward.1} parent=11 // pred_fallthru
          _
        // Predicated region
        $region29: #{nrn_block_adapter_forward.1} parent=11 // pred_check
          %p353 = pneg %p153
        $region30: #{nrn_block_adapter_forward.1} parent=11 // pred_check_branch
          %355 = sbr.rel (%p353) target = $region32
        $region31: #{nrn_block_adapter_forward.1} parent=11 // pred_region
          _
        $region32: #{nrn_block_adapter_forward.1} parent=11 // pred_fallthru
          _
        // Predicated region
        $region33: #{nrn_block_adapter_forward.1} parent=11 // pred_check
          %p356 = pneg %p174
        $region34: #{nrn_block_adapter_forward.1} parent=11 // pred_check_branch
          %358 = sbr.rel (%p356) target = $region36
        $region35: #{nrn_block_adapter_forward.1} parent=11 // pred_region
          _
        $region36: #{nrn_block_adapter_forward.1} parent=11 // pred_fallthru
          _
        // Predicated region
        $region37: #{nrn_block_adapter_forward.1} parent=11 // pred_check
          %p359 = pneg %p195
        $region38: #{nrn_block_adapter_forward.1} parent=11 // pred_check_branch
          %361 = sbr.rel (%p359) target = $region40
        $region39: #{nrn_block_adapter_forward.1} parent=11 // pred_region
          _
        $region40: #{nrn_block_adapter_forward.1} parent=11 // pred_fallthru
          _
        // Predicated region
        $region41: #{nrn_block_adapter_forward.1} parent=11 // pred_check
          %p362 = pneg %p216
        $region42: #{nrn_block_adapter_forward.1} parent=11 // pred_check_branch
          %364 = sbr.rel (%p362) target = $region44
        $region43: #{nrn_block_adapter_forward.1} parent=11 // pred_region
          _
        $region44: #{nrn_block_adapter_forward.1} parent=11 // pred_fallthru
          _
        // Predicated region
        $region45: #{nrn_block_adapter_forward.1} parent=11 // pred_check
          %p365 = pneg %p237
        $region46: #{nrn_block_adapter_forward.1} parent=11 // pred_check_branch
          %367 = sbr.rel (%p365) target = $region48
        $region47: #{nrn_block_adapter_forward.1} parent=11 // pred_region
          _
        $region48: #{nrn_block_adapter_forward.1} parent=11 // pred_fallthru
          _
        // Predicated region
        $region49: #{nrn_block_adapter_forward.1} parent=11 // pred_check
          %p368 = pneg %p258
        $region50: #{nrn_block_adapter_forward.1} parent=11 // pred_check_branch
          %370 = sbr.rel (%p368) target = $region52
        $region51: #{nrn_block_adapter_forward.1} parent=11 // pred_region
          _
        $region52: #{nrn_block_adapter_forward.1} parent=11 // pred_fallthru
          _
        // Predicated region
        $region53: #{nrn_block_adapter_forward.1} parent=11 // pred_check
          %p371 = pneg %p279
        $region54: #{nrn_block_adapter_forward.1} parent=11 // pred_check_branch
          %373 = sbr.rel (%p371) target = $region56
        $region55: #{nrn_block_adapter_forward.1} parent=11 // pred_region
          _
        $region56: #{nrn_block_adapter_forward.1} parent=11 // pred_fallthru
          _
        // Predicated region
        $region57: #{nrn_block_adapter_forward.1} parent=11 // pred_check
          %p374 = pneg %p300
        $region58: #{nrn_block_adapter_forward.1} parent=11 // pred_check_branch
          %376 = sbr.rel (%p374) target = $region60
        $region59: #{nrn_block_adapter_forward.1} parent=11 // pred_region
          _
        $region60: #{nrn_block_adapter_forward.1} parent=11 // pred_fallthru
          _
      $region12: #{nrn_block_adapter_forward.1} parent=5 // pred_fallthru
        _
      %p377 = scmp.lt.s32.totalorder %s22, 2
      // Predicated region
      $region61: #{nrn_block_adapter_forward.1} parent=5 // pred_check
        %p378 = pneg %p377
      $region62: #{nrn_block_adapter_forward.1} parent=5 // pred_check_branch
        %380 = sbr.rel (%p378) target = $region64
      $region63: #{nrn_block_adapter_forward.1} parent=5 // pred_region
        // Predicated region
        $region65: #{nrn_block_adapter_forward.1} parent=63 // pred_check
          %p381 = pneg %p42
        $region66: #{nrn_block_adapter_forward.1} parent=63 // pred_check_branch
          %383 = sbr.rel (%p381) target = $region68
        $region67: #{nrn_block_adapter_forward.1} parent=63 // pred_region
          %s384 = smul.u32 2, %s22
          %p385 = scmp.lt.s32.totalorder %s384, 3
          %s386 = scalar_select %p385, %s384, 3
          %s387 = smul.addr %s386, 8
          %s388 = scalar_lea.vmem %s0, %s387
          %s389 = smul.u32 2, %s22
        $region68: #{nrn_block_adapter_forward.1} parent=63 // pred_fallthru
          _
      $region64: #{nrn_block_adapter_forward.1} parent=5 // pred_fallthru
        _
      %p390 = scmp.le.s32.totalorder 1, %s22
      %p391 = scmp.lt.s32.totalorder %s22, 3
      %p392 = pnand %p390, %p391
      %p393 = pneg %p392
      // Predicated region
      $region69: #{nrn_block_adapter_forward.1} parent=5 // pred_check
        _
      $region70: #{nrn_block_adapter_forward.1} parent=5 // pred_check_branch
        %395 = sbr.rel (%p392) target = $region72
      $region71: #{nrn_block_adapter_forward.1} parent=5 // pred_region
        %s396 = ssub.s32 %s22, 1
        %s397 = smul.u32 2, %s27
        %p398 = scmp.lt.s32.totalorder %s397, 3
        %s399 = scalar_select %p398, %s397, 3
        %s400 = smul.addr %s399, 8
        %s401 = scalar_lea.vmem %s0, %s400
        %p402 = pneg %p48
        %p403 = pneg %p45
        %p404 = pneg %p69
        %p405 = pneg %p66
        %p406 = pneg %p90
        %p407 = pneg %p87
        %p408 = pneg %p111
        %p409 = pneg %p108
        %p410 = pneg %p132
        %p411 = pneg %p129
        %p412 = pneg %p153
        %p413 = pneg %p150
        %p414 = pneg %p174
        %p415 = pneg %p171
        %p416 = pneg %p195
        %p417 = pneg %p192
        %p418 = pneg %p216
        %p419 = pneg %p213
        %p420 = pneg %p237
        %p421 = pneg %p234
        %p422 = pneg %p258
        %p423 = pneg %p255
        %p424 = pneg %p279
        %p425 = pneg %p276
        %p426 = pneg %p300
        %p427 = pneg %p297
        %p428 = pneg %p326
        %p429 = pneg %p323
        %s430 = sand.u32 %s313, 1
        %s431 = scalar_lea.sflag [#allocation3], %s430
        %s432 = sand.u32 %s313, 1
        %s433 = smul.addr %s432, 16
        %s434 = scalar_lea.vmem [#allocation2], %s433
        %s435 = smul.u32 2, %s27
        %p436 = scmp.lt.s32.totalorder %s435, 3
        %s437 = scalar_select %p436, %s435, 3
        %s438 = smul.addr %s437, 8
        %s439 = scalar_lea.vmem %s0, %s438
        %s440 = smul.u32 2, %s27
        %s441 = smul.u32 2, %s27
        %v442 = vld [vmem:[%s439] sm:$0xff]
        %v443 = vld [vmem:[%s439 + $0x8] sm:$0xff]
        %vm444 = vcmask 261120
        %v445 = vsel %vm444, %v442, 0.0
        %446 = vadd.xlane.f32.xlu0 %v445
        %v447 = vpop.xlane.xlu0 %446
        %v448 = vsel %vm444, %v443, 0.0
        %449 = vadd.xlane.f32.xlu0 %v448
        %v450 = vpop.xlane.xlu0 %449
        %v451 = vrcp.pop 32.0
        %v452 = vmul.f32 32.0, %v451
        %v453 = vsub.f32 1.0, %v452
        %v454 = vmul.f32 %v451, %v453
        %v455 = vadd.f32 %v451, %v454
        %vm456 = vweird.f32 %v451
        %v457 = vsel %vm456, %v451, %v455
        %v458 = vmul.f32 %v447, %v457
        %v459 = vmul.f32 %v450, %v457
        %v460 = vsub.f32 %v442, %v458
        %v461 = vsub.f32 %v443, %v459
        %v462 = vmul.f32 %v460, %v460
        %v463 = vmul.f32 %v461, %v461
        %v464 = vsel %vm444, %v462, 0.0
        %465 = vadd.xlane.f32.xlu0 %v464
        %v466 = vpop.xlane.xlu0 %465
        %v467 = vsel %vm444, %v463, 0.0
        %468 = vadd.xlane.f32.xlu0 %v467
        %v469 = vpop.xlane.xlu0 %468
        %v470 = vmul.f32 %v466, %v457
        %v471 = vmul.f32 %v469, %v457
        %v472 = vadd.f32 %v470, 1e-05
        %v473 = vadd.f32 %v471, 1e-05
        %v474 = vrsqrt.pop %v472
        %v475 = vmul.f32 %v474, %v472
        %v476 = vmul.f32 %v475, %v474
        %v477 = vmul.f32 0.5, %v476
        %v478 = vsub.f32 1.5, %v477
        %v479 = vmul.f32 %v474, %v478
        %vm480 = vweird.f32 %v472
        %vm481 = vweird.f32 %v474
        %vm482 = vmor %vm480, %vm481
        %v483 = vsel %vm482, %v474, %v479
        %v484 = vrsqrt.pop %v473
        %v485 = vmul.f32 %v484, %v473
        %v486 = vmul.f32 %v485, %v484
        %v487 = vmul.f32 0.5, %v486
        %v488 = vsub.f32 1.5, %v487
        %v489 = vmul.f32 %v484, %v488
        %vm490 = vweird.f32 %v473
        %vm491 = vweird.f32 %v484
        %vm492 = vmor %vm490, %vm491
        %v493 = vsel %vm492, %v484, %v489
        %v494 = vmul.f32 %v460, %v483
        %v495 = vmul.f32 %v461, %v493
        %v496 = vld [vmem:[%s1] sm:$0x1]
        %v498 = vperm.slane %v496, 0
        %v500 = vmul.f32 %v494, %v498
        %v501 = vmul.f32 %v495, %v498
        %v502 = vld [vmem:[%s2] sm:$0x1]
        %v504 = vperm.slane %v502, 0
        %v506 = vadd.f32 %v500, %v504
        %v507 = vadd.f32 %v501, %v504
        %v508 = vld [vmem:[%s3] sm:$0xff]
        %v509 = vld [vmem:[%s3 + $0x8] sm:$0xff]
        %v510 = vld [vmem:[%s4] sm:$0xff]
        %v511 = vld [vmem:[%s4 + $0x8] sm:$0xff]
        %513 = vset.pattern.permute.xlu0 0
        %514 = vperm.xlu0 %513, %v510
        %v515 = vpop.permute.xlu0 %514
        %518 = vset.pattern.permute.xlu0 0
        %519 = vperm.xlu0 %518, %v511
        %v520 = vpop.permute.xlu0 %519
        %vm522 = vcmask 64512
        %v524 = vsel %vm522, %v508, 0
        %v527 = vsel %vm522, %v509, 0
        %529 = vmatpush.msra.mxu0 0.0
        %530 = vmatpush.msra.mxu0 0.0
        %531 = vmatpush.msra.mxu0 0.0
        %532 = vmatpush.msra.mxu0 0.0
        %533 = vmatpush.msra.mxu0 0.0
        %534 = vmatpush.msra.mxu0 0.0
        %535 = vmatpush.msra.mxu0 0.0
        %536 = vmatpush.msra.mxu0 0.0
        %537 = vmatpush.msra.mxu0 0.0
        %538 = vmatpush.msra.mxu0 0.0
        %539 = vmatpush.msra.mxu0 0.0
        %540 = vmatpush.msra.mxu0 0.0
        %541 = vmatpush.msra.mxu0 0.0
        %542 = vmatpush.msra.mxu0 0.0
        %543 = vmatpush.msra.mxu0 0.0
        %544 = vmatpush.msra.mxu0 %v506
        %545 = vmatmul.f32.gmra.mxu0 %v524
        %v546 = vpop.f32.mrf.mxu0
        %v547 = vadd.f32 %v515, %v546
        %548 = vmatmul.f32.gmra.mxu0 %v527
        %v549 = vpop.f32.mrf.mxu0
        %v550 = vadd.f32 %v520, %v549
        %551 = vdwg.mxu0
        %552 = vmatpush.msra.mxu0 0.0
        %553 = vmatpush.msra.mxu0 0.0
        %554 = vmatpush.msra.mxu0 0.0
        %555 = vmatpush.msra.mxu0 0.0
        %556 = vmatpush.msra.mxu0 0.0
        %557 = vmatpush.msra.mxu0 0.0
        %558 = vmatpush.msra.mxu0 0.0
        %559 = vmatpush.msra.mxu0 0.0
        %560 = vmatpush.msra.mxu0 0.0
        %561 = vmatpush.msra.mxu0 0.0
        %562 = vmatpush.msra.mxu0 0.0
        %563 = vmatpush.msra.mxu0 0.0
        %564 = vmatpush.msra.mxu0 0.0
        %565 = vmatpush.msra.mxu0 0.0
        %566 = vmatpush.msra.mxu0 0.0
        %567 = vmatpush.msra.mxu0 %v507
        %568 = vmatmul.f32.gmra.mxu0 %v524
        %v569 = vpop.f32.mrf.mxu0
        %v570 = vadd.f32 %v515, %v569
        %571 = vmatmul.f32.gmra.mxu0 %v527
        %v572 = vpop.f32.mrf.mxu0
        %v573 = vadd.f32 %v520, %v572
        %574 = vdwg.mxu0
        %v575 = vmul.f32 %v547, 0.5
        %v576 = vmul.f32 %v550, 0.5
        %v577 = vmul.f32 %v570, 0.5
        %v578 = vmul.f32 %v573, 0.5
        %v579 = vmul.f32 %v547, 0.70710677
        %v580 = vmul.f32 %v550, 0.70710677
        %v581 = vmul.f32 %v570, 0.70710677
        %v582 = vmul.f32 %v573, 0.70710677
        %v583 = vmul.f32 %v579, %v579
        %v584 = vmin.f32 16.0, %v583
        %v585 = vmul.f32 %v584, 2.1237322e-06
        %v586 = vadd.f32 %v585, 0.00028619796
        %v587 = vmul.f32 %v584, %v586
        %v588 = vadd.f32 %v587, 0.0036580483
        %v589 = vmul.f32 %v584, %v588
        %v590 = vadd.f32 %v589, 0.05243302
        %v591 = vmul.f32 %v584, %v590
        %v592 = vadd.f32 %v591, 0.18741608
        %v593 = vmul.f32 %v584, %v592
        %v594 = vadd.f32 %v593, 1.1283791
        %v595 = vmul.f32 %v579, %v594
        %v596 = vmul.f32 %v584, 3.8918573e-05
        %v597 = vadd.f32 %v596, 0.001143296
        %v598 = vmul.f32 %v584, %v597
        %v599 = vadd.f32 %v598, 0.014752088
        %v600 = vmul.f32 %v584, %v599
        %v601 = vadd.f32 %v600, 0.112945676
        %v602 = vmul.f32 %v584, %v601
        %v603 = vadd.f32 %v602, 0.4994258
        %v604 = vmul.f32 %v584, %v603
        %v605 = vadd.f32 %v604, 1.0
        %v606 = vrcp.pop %v605
        %v607 = vmul.f32 %v605, %v606
        %v608 = vsub.f32 1.0, %v607
        %v609 = vmul.f32 %v606, %v608
        %v610 = vadd.f32 %v606, %v609
        %vm611 = vweird.f32 %v605
        %vm612 = vweird.f32 %v606
        %vm613 = vmor %vm611, %vm612
        %v614 = vsel %vm613, %v606, %v610
        %v615 = vand.u32 2147483647, %v605
        %vm616 = vcmp.eq.f32.partialorder %v615, 8.507059e+37
        %v617 = vand.u32 %v605, 2147483648
        %v618 = vor.u32 1.1754944e-38, %v617
        %v619 = vsel %vm616, %v618, %v614
        %v620 = vmul.f32 %v595, %v619
        %v621 = vmin.f32 %v620, 1.0
        %v622 = vmax.f32 %v621, -1.0
        %v623 = vmul.f32 %v580, %v580
        %v624 = vmin.f32 16.0, %v623
        %v625 = vmul.f32 %v624, 2.1237322e-06
        %v626 = vadd.f32 %v625, 0.00028619796
        %v627 = vmul.f32 %v624, %v626
        %v628 = vadd.f32 %v627, 0.0036580483
        %v629 = vmul.f32 %v624, %v628
        %v630 = vadd.f32 %v629, 0.05243302
        %v631 = vmul.f32 %v624, %v630
        %v632 = vadd.f32 %v631, 0.18741608
        %v633 = vmul.f32 %v624, %v632
        %v634 = vadd.f32 %v633, 1.1283791
        %v635 = vmul.f32 %v580, %v634
        %v636 = vmul.f32 %v624, 3.8918573e-05
        %v637 = vadd.f32 %v636, 0.001143296
        %v638 = vmul.f32 %v624, %v637
        %v639 = vadd.f32 %v638, 0.014752088
        %v640 = vmul.f32 %v624, %v639
        %v641 = vadd.f32 %v640, 0.112945676
        %v642 = vmul.f32 %v624, %v641
        %v643 = vadd.f32 %v642, 0.4994258
        %v644 = vmul.f32 %v624, %v643
        %v645 = vadd.f32 %v644, 1.0
        %v646 = vrcp.pop %v645
        %v647 = vmul.f32 %v645, %v646
        %v648 = vsub.f32 1.0, %v647
        %v649 = vmul.f32 %v646, %v648
        %v650 = vadd.f32 %v646, %v649
        %vm651 = vweird.f32 %v645
        %vm652 = vweird.f32 %v646
        %vm653 = vmor %vm651, %vm652
        %v654 = vsel %vm653, %v646, %v650
        %v655 = vand.u32 2147483647, %v645
        %vm656 = vcmp.eq.f32.partialorder %v655, 8.507059e+37
        %v657 = vand.u32 %v645, 2147483648
        %v658 = vor.u32 1.1754944e-38, %v657
        %v659 = vsel %vm656, %v658, %v654
        %v660 = vmul.f32 %v635, %v659
        %v661 = vmin.f32 %v660, 1.0
        %v662 = vmax.f32 %v661, -1.0
        %v663 = vmul.f32 %v581, %v581
        %v664 = vmin.f32 16.0, %v663
        %v665 = vmul.f32 %v664, 2.1237322e-06
        %v666 = vadd.f32 %v665, 0.00028619796
        %v667 = vmul.f32 %v664, %v666
        %v668 = vadd.f32 %v667, 0.0036580483
        %v669 = vmul.f32 %v664, %v668
        %v670 = vadd.f32 %v669, 0.05243302
        %v671 = vmul.f32 %v664, %v670
        %v672 = vadd.f32 %v671, 0.18741608
        %v673 = vmul.f32 %v664, %v672
        %v674 = vadd.f32 %v673, 1.1283791
        %v675 = vmul.f32 %v581, %v674
        %v676 = vmul.f32 %v664, 3.8918573e-05
        %v677 = vadd.f32 %v676, 0.001143296
        %v678 = vmul.f32 %v664, %v677
        %v679 = vadd.f32 %v678, 0.014752088
        %v680 = vmul.f32 %v664, %v679
        %v681 = vadd.f32 %v680, 0.112945676
        %v682 = vmul.f32 %v664, %v681
        %v683 = vadd.f32 %v682, 0.4994258
        %v684 = vmul.f32 %v664, %v683
        %v685 = vadd.f32 %v684, 1.0
        %v686 = vrcp.pop %v685
        %v687 = vmul.f32 %v685, %v686
        %v688 = vsub.f32 1.0, %v687
        %v689 = vmul.f32 %v686, %v688
        %v690 = vadd.f32 %v686, %v689
        %vm691 = vweird.f32 %v685
        %vm692 = vweird.f32 %v686
        %vm693 = vmor %vm691, %vm692
        %v694 = vsel %vm693, %v686, %v690
        %v695 = vand.u32 2147483647, %v685
        %vm696 = vcmp.eq.f32.partialorder %v695, 8.507059e+37
        %v697 = vand.u32 %v685, 2147483648
        %v698 = vor.u32 1.1754944e-38, %v697
        %v699 = vsel %vm696, %v698, %v694
        %v700 = vmul.f32 %v675, %v699
        %v701 = vmin.f32 %v700, 1.0
        %v702 = vmax.f32 %v701, -1.0
        %v703 = vmul.f32 %v582, %v582
        %v704 = vmin.f32 16.0, %v703
        %v705 = vmul.f32 %v704, 2.1237322e-06
        %v706 = vadd.f32 %v705, 0.00028619796
        %v707 = vmul.f32 %v704, %v706
        %v708 = vadd.f32 %v707, 0.0036580483
        %v709 = vmul.f32 %v704, %v708
        %v710 = vadd.f32 %v709, 0.05243302
        %v711 = vmul.f32 %v704, %v710
        %v712 = vadd.f32 %v711, 0.18741608
        %v713 = vmul.f32 %v704, %v712
        %v714 = vadd.f32 %v713, 1.1283791
        %v715 = vmul.f32 %v582, %v714
        %v716 = vmul.f32 %v704, 3.8918573e-05
        %v717 = vadd.f32 %v716, 0.001143296
        %v718 = vmul.f32 %v704, %v717
        %v719 = vadd.f32 %v718, 0.014752088
        %v720 = vmul.f32 %v704, %v719
        %v721 = vadd.f32 %v720, 0.112945676
        %v722 = vmul.f32 %v704, %v721
        %v723 = vadd.f32 %v722, 0.4994258
        %v724 = vmul.f32 %v704, %v723
        %v725 = vadd.f32 %v724, 1.0
        %v726 = vrcp.pop %v725
        %v727 = vmul.f32 %v725, %v726
        %v728 = vsub.f32 1.0, %v727
        %v729 = vmul.f32 %v726, %v728
        %v730 = vadd.f32 %v726, %v729
        %vm731 = vweird.f32 %v725
        %vm732 = vweird.f32 %v726
        %vm733 = vmor %vm731, %vm732
        %v734 = vsel %vm733, %v726, %v730
        %v735 = vand.u32 2147483647, %v725
        %vm736 = vcmp.eq.f32.partialorder %v735, 8.507059e+37
        %v737 = vand.u32 %v725, 2147483648
        %v738 = vor.u32 1.1754944e-38, %v737
        %v739 = vsel %vm736, %v738, %v734
        %v740 = vmul.f32 %v715, %v739
        %v741 = vmin.f32 %v740, 1.0
        %v742 = vmax.f32 %v741, -1.0
        %v743 = vadd.f32 %v622, 1.0
        %v744 = vadd.f32 %v662, 1.0
        %v745 = vadd.f32 %v702, 1.0
        %v746 = vadd.f32 %v742, 1.0
        %v747 = vmul.f32 %v575, %v743
        %v748 = vmul.f32 %v576, %v744
        %v749 = vmul.f32 %v577, %v745
        %v750 = vmul.f32 %v578, %v746
        %v751 = vld [vmem:[%s5] sm:$0xff]
        %v752 = vld [vmem:[%s6] sm:$0xff]
        %754 = vset.pattern.permute.xlu0 0
        %755 = vperm.xlu0 %754, %v752
        %v756 = vpop.permute.xlu0 %755
        %vm758 = vcmask 130048
        %v760 = vsel %vm758, %v751, 0
        %762 = vmatpush.msra.mxu0 0.0
        %763 = vmatpush.msra.mxu0 0.0
        %764 = vmatpush.msra.mxu0 0.0
        %765 = vmatpush.msra.mxu0 0.0
        %766 = vmatpush.msra.mxu0 0.0
        %767 = vmatpush.msra.mxu0 0.0
        %768 = vmatpush.msra.mxu0 0.0
        %769 = vmatpush.msra.mxu0 0.0
        %770 = vmatpush.msra.mxu0 0.0
        %771 = vmatpush.msra.mxu0 0.0
        %772 = vmatpush.msra.mxu0 0.0
        %773 = vmatpush.msra.mxu0 0.0
        %774 = vmatpush.msra.mxu0 0.0
        %775 = vmatpush.msra.mxu0 0.0
        %776 = vmatpush.msra.mxu0 %v748
        %777 = vmatpush.msra.mxu0 %v747
        %778 = vmatmul.f32.gmra.mxu0 %v760
        %v779 = vpop.f32.mrf.mxu0
        %v780 = vadd.f32 %v756, %v779
        %781 = vdwg.mxu0
        %782 = vmatpush.msra.mxu0 0.0
        %783 = vmatpush.msra.mxu0 0.0
        %784 = vmatpush.msra.mxu0 0.0
        %785 = vmatpush.msra.mxu0 0.0
        %786 = vmatpush.msra.mxu0 0.0
        %787 = vmatpush.msra.mxu0 0.0
        %788 = vmatpush.msra.mxu0 0.0
        %789 = vmatpush.msra.mxu0 0.0
        %790 = vmatpush.msra.mxu0 0.0
        %791 = vmatpush.msra.mxu0 0.0
        %792 = vmatpush.msra.mxu0 0.0
        %793 = vmatpush.msra.mxu0 0.0
        %794 = vmatpush.msra.mxu0 0.0
        %795 = vmatpush.msra.mxu0 0.0
        %796 = vmatpush.msra.mxu0 %v750
        %797 = vmatpush.msra.mxu0 %v749
        %798 = vmatmul.f32.gmra.mxu0 %v760
        %v799 = vpop.f32.mrf.mxu0
        %v800 = vadd.f32 %v756, %v799
        %801 = vdwg.mxu0
        %v802 = vadd.f32 %v442, %v780
        %v803 = vadd.f32 %v443, %v800
        %v804 = vsel %vm444, %v802, 0.0
        %805 = vadd.xlane.f32.xlu0 %v804
        %v806 = vpop.xlane.xlu0 %805
        %v807 = vsel %vm444, %v803, 0.0
        %808 = vadd.xlane.f32.xlu0 %v807
        %v809 = vpop.xlane.xlu0 %808
        %v810 = vmul.f32 %v806, %v457
        %v811 = vmul.f32 %v809, %v457
        %v812 = vsub.f32 %v802, %v810
        %v813 = vsub.f32 %v803, %v811
        %v814 = vmul.f32 %v812, %v812
        %v815 = vmul.f32 %v813, %v813
        %v816 = vsel %vm444, %v814, 0.0
        %817 = vadd.xlane.f32.xlu0 %v816
        %v818 = vpop.xlane.xlu0 %817
        %v819 = vsel %vm444, %v815, 0.0
        %820 = vadd.xlane.f32.xlu0 %v819
        %v821 = vpop.xlane.xlu0 %820
        %v822 = vmul.f32 %v818, %v457
        %v823 = vmul.f32 %v821, %v457
        %v824 = vadd.f32 %v822, 1e-05
        %v825 = vadd.f32 %v823, 1e-05
        %v826 = vrsqrt.pop %v824
        %v827 = vmul.f32 %v826, %v824
        %v828 = vmul.f32 %v827, %v826
        %v829 = vmul.f32 0.5, %v828
        %v830 = vsub.f32 1.5, %v829
        %v831 = vmul.f32 %v826, %v830
        %vm832 = vweird.f32 %v824
        %vm833 = vweird.f32 %v826
        %vm834 = vmor %vm832, %vm833
        %v835 = vsel %vm834, %v826, %v831
        %v836 = vrsqrt.pop %v825
        %v837 = vmul.f32 %v836, %v825
        %v838 = vmul.f32 %v837, %v836
        %v839 = vmul.f32 0.5, %v838
        %v840 = vsub.f32 1.5, %v839
        %v841 = vmul.f32 %v836, %v840
        %vm842 = vweird.f32 %v825
        %vm843 = vweird.f32 %v836
        %vm844 = vmor %vm842, %vm843
        %v845 = vsel %vm844, %v836, %v841
        %v846 = vmul.f32 %v812, %v835
        %v847 = vmul.f32 %v813, %v845
        %v848 = vld [vmem:[%s7] sm:$0xff]
        %v849 = vmul.f32 %v846, %v848
        %v850 = vmul.f32 %v847, %v848
        %v851 = vld [vmem:[%s8] sm:$0xff]
        %v852 = vadd.f32 %v849, %v851
        %v853 = vadd.f32 %v850, %v851
        %v854 = vld [vmem:[%s9] sm:$0xff]
        %v855 = vld [vmem:[%s9 + $0x8] sm:$0xff]
        %v856 = vld [vmem:[%s9 + $0x10] sm:$0xff]
        %v857 = vld [vmem:[%s9 + $0x18] sm:$0xff]
        %v858 = vld [vmem:[%s10] sm:$0x1]
        %v860 = vperm.slane %v858, 0
        %v863 = vsel %vm444, %v852, 0
        %v866 = vsel %vm444, %v853, 0
        %868 = vmatpush.msra.mxu0 0.0
        %869 = vmatpush.msra.mxu0 0.0
        %870 = vmatpush.msra.mxu0 0.0
        %871 = vmatpush.msra.mxu0 0.0
        %872 = vmatpush.msra.mxu0 0.0
        %873 = vmatpush.msra.mxu0 0.0
        %874 = vmatpush.msra.mxu0 0.0
        %875 = vmatpush.msra.mxu0 0.0
        %876 = vmatpush.msra.mxu0 0.0
        %877 = vmatpush.msra.mxu0 0.0
        %878 = vmatpush.msra.mxu0 0.0
        %879 = vmatpush.msra.mxu0 0.0
        %880 = vmatpush.msra.mxu0 %v857
        %881 = vmatpush.msra.mxu0 %v856
        %882 = vmatpush.msra.mxu0 %v855
        %883 = vmatpush.msra.mxu0 %v854
        %884 = vmatmul.f32.gmra.mxu0 %v863
        %v885 = vpop.f32.mrf.mxu0
        %v886 = vadd.f32 %v860, %v885
        %887 = vmatmul.f32.gmra.mxu0 %v866
        %v888 = vpop.f32.mrf.mxu0
        %v889 = vadd.f32 %v860, %v888
        %890 = vdwg.mxu0
        %v891 = vmul.f32 %v886, 0.5
        %v892 = vmul.f32 %v889, 0.5
        %v893 = vmul.f32 %v886, 0.70710677
        %v894 = vmul.f32 %v889, 0.70710677
        %v895 = vmul.f32 %v893, %v893
        %v896 = vmin.f32 16.0, %v895
        %v897 = vmul.f32 %v896, 2.1237322e-06
        %v898 = vadd.f32 %v897, 0.00028619796
        %v899 = vmul.f32 %v896, %v898
        %v900 = vadd.f32 %v899, 0.0036580483
        %v901 = vmul.f32 %v896, %v900
        %v902 = vadd.f32 %v901, 0.05243302
        %v903 = vmul.f32 %v896, %v902
        %v904 = vadd.f32 %v903, 0.18741608
        %v905 = vmul.f32 %v896, %v904
        %v906 = vadd.f32 %v905, 1.1283791
        %v907 = vmul.f32 %v893, %v906
        %v908 = vmul.f32 %v896, 3.8918573e-05
        %v909 = vadd.f32 %v908, 0.001143296
        %v910 = vmul.f32 %v896, %v909
        %v911 = vadd.f32 %v910, 0.014752088
        %v912 = vmul.f32 %v896, %v911
        %v913 = vadd.f32 %v912, 0.112945676
        %v914 = vmul.f32 %v896, %v913
        %v915 = vadd.f32 %v914, 0.4994258
        %v916 = vmul.f32 %v896, %v915
        %v917 = vadd.f32 %v916, 1.0
        %v918 = vrcp.pop %v917
        %v919 = vmul.f32 %v917, %v918
        %v920 = vsub.f32 1.0, %v919
        %v921 = vmul.f32 %v918, %v920
        %v922 = vadd.f32 %v918, %v921
        %vm923 = vweird.f32 %v917
        %vm924 = vweird.f32 %v918
        %vm925 = vmor %vm923, %vm924
        %v926 = vsel %vm925, %v918, %v922
        %v927 = vand.u32 2147483647, %v917
        %vm928 = vcmp.eq.f32.partialorder %v927, 8.507059e+37
        %v929 = vand.u32 %v917, 2147483648
        %v930 = vor.u32 1.1754944e-38, %v929
        %v931 = vsel %vm928, %v930, %v926
        %v932 = vmul.f32 %v907, %v931
        %v933 = vmin.f32 %v932, 1.0
        %v934 = vmax.f32 %v933, -1.0
        %v935 = vmul.f32 %v894, %v894
        %v936 = vmin.f32 16.0, %v935
        %v937 = vmul.f32 %v936, 2.1237322e-06
        %v938 = vadd.f32 %v937, 0.00028619796
        %v939 = vmul.f32 %v936, %v938
        %v940 = vadd.f32 %v939, 0.0036580483
        %v941 = vmul.f32 %v936, %v940
        %v942 = vadd.f32 %v941, 0.05243302
        %v943 = vmul.f32 %v936, %v942
        %v944 = vadd.f32 %v943, 0.18741608
        %v945 = vmul.f32 %v936, %v944
        %v946 = vadd.f32 %v945, 1.1283791
        %v947 = vmul.f32 %v894, %v946
        %v948 = vmul.f32 %v936, 3.8918573e-05
        %v949 = vadd.f32 %v948, 0.001143296
        %v950 = vmul.f32 %v936, %v949
        %v951 = vadd.f32 %v950, 0.014752088
        %v952 = vmul.f32 %v936, %v951
        %v953 = vadd.f32 %v952, 0.112945676
        %v954 = vmul.f32 %v936, %v953
        %v955 = vadd.f32 %v954, 0.4994258
        %v956 = vmul.f32 %v936, %v955
        %v957 = vadd.f32 %v956, 1.0
        %v958 = vrcp.pop %v957
        %v959 = vmul.f32 %v957, %v958
        %v960 = vsub.f32 1.0, %v959
        %v961 = vmul.f32 %v958, %v960
        %v962 = vadd.f32 %v958, %v961
        %vm963 = vweird.f32 %v957
        %vm964 = vweird.f32 %v958
        %vm965 = vmor %vm963, %vm964
        %v966 = vsel %vm965, %v958, %v962
        %v967 = vand.u32 2147483647, %v957
        %vm968 = vcmp.eq.f32.partialorder %v967, 8.507059e+37
        %v969 = vand.u32 %v957, 2147483648
        %v970 = vor.u32 1.1754944e-38, %v969
        %v971 = vsel %vm968, %v970, %v966
        %v972 = vmul.f32 %v947, %v971
        %v973 = vmin.f32 %v972, 1.0
        %v974 = vmax.f32 %v973, -1.0
        %v975 = vadd.f32 %v934, 1.0
        %v976 = vadd.f32 %v974, 1.0
        %v977 = vmul.f32 %v891, %v975
        %v978 = vmul.f32 %v892, %v976
        %v979 = vld [vmem:[%s11] sm:$0xff]
        %v980 = vld [vmem:[%s11 + $0x8] sm:$0xff]
        %v981 = vld [vmem:[%s11 + $0x10] sm:$0xff]
        %v982 = vld [vmem:[%s11 + $0x18] sm:$0xff]
        %v983 = vld [vmem:[%s11 + $0x20] sm:$0xff]
        %v984 = vld [vmem:[%s11 + $0x28] sm:$0xff]
        %v985 = vld [vmem:[%s11 + $0x30] sm:$0xff]
        %v986 = vld [vmem:[%s11 + $0x38] sm:$0xff]
        %v987 = vld [vmem:[%s12] sm:$0x1]
        %v989 = vperm.slane %v987, 0
        %vm991 = vcmask 523264
        %v993 = vsel %vm991, %v977, 0
        %v996 = vsel %vm991, %v978, 0
        %998 = vmatpush.msra.mxu0 0.0
        %999 = vmatpush.msra.mxu0 0.0
        %1000 = vmatpush.msra.mxu0 0.0
        %1001 = vmatpush.msra.mxu0 0.0
        %1002 = vmatpush.msra.mxu0 0.0
        %1003 = vmatpush.msra.mxu0 0.0
        %1004 = vmatpush.msra.mxu0 0.0
        %1005 = vmatpush.msra.mxu0 0.0
        %1006 = vmatpush.msra.mxu0 %v986
        %1007 = vmatpush.msra.mxu0 %v985
        %1008 = vmatpush.msra.mxu0 %v984
        %1009 = vmatpush.msra.mxu0 %v983
        %1010 = vmatpush.msra.mxu0 %v982
        %1011 = vmatpush.msra.mxu0 %v981
        %1012 = vmatpush.msra.mxu0 %v980
        %1013 = vmatpush.msra.mxu0 %v979
        %1014 = vmatmul.f32.gmra.mxu0 %v993
        %v1015 = vpop.f32.mrf.mxu0
        %v1016 = vadd.f32 %v989, %v1015
        %1017 = vmatmul.f32.gmra.mxu0 %v996
        %v1018 = vpop.f32.mrf.mxu0
        %v1019 = vadd.f32 %v989, %v1018
        %1020 = vdwg.mxu0
        %v1021 = vadd.f32 %v852, %v1016
        %v1022 = vadd.f32 %v853, %v1019
        %1023 = vst.msk [vmem:[%s434] sm:$0xff] %vm444, %v1021
        %1024 = vst.msk [vmem:[%s434 + $0x8] sm:$0xff] %vm444, %v1022
        %s1025 = sand.u32 %s313, 1
        %s1026 = scalar_lea.sflag [#allocation3], %s1025
        %s1027 = sand.u32 %s313, 1
        %s1028 = smul.addr %s1027, 16
        %s1029 = scalar_lea.vmem [#allocation2], %s1028
        // Predicated region
        $region73: #{nrn_block_adapter_forward.1} parent=71 // pred_check
          %p1030 = pneg %p323
        $region74: #{nrn_block_adapter_forward.1} parent=71 // pred_check_branch
          %1032 = sbr.rel (%p1030) target = $region76
        $region75: #{nrn_block_adapter_forward.1} parent=71 // pred_region
          %s1033 = smul.u32 2, %s27
          %1035 = vsyncadd %s1026, 0
          %s1036 = smul.addr %s1033, 8
          %s1037 = scalar_lea.hbm %s13, %s1036
          %s1038 = sshll.u32 %s1029, 4
          %s1039 = int_to_ptr.vmem [resolvable:$true] %s1038
          %s1040 = sshll.u32 %s1037, 4
          %s1041 = int_to_ptr.hbm [resolvable:$true] %s1040
          %1046 = dma.vmem_to_hbm [thread:$0]  %s1039, 256, %s1041, %s1026, 128, 128, 8
        $region76: #{nrn_block_adapter_forward.1} parent=71 // pred_fallthru
          _
      $region72: #{nrn_block_adapter_forward.1} parent=5 // pred_fallthru
        _
      %p1047 = scmp.le.s32.totalorder 2, %s22
      // Predicated region
      $region77: #{nrn_block_adapter_forward.1} parent=5 // pred_check
        %p1048 = pneg %p1047
      $region78: #{nrn_block_adapter_forward.1} parent=5 // pred_check_branch
        %1050 = sbr.rel (%p1048) target = $region80
      $region79: #{nrn_block_adapter_forward.1} parent=5 // pred_region
        %s1051 = ssub.s32 %s22, 2
        // Predicated region
        $region81: #{nrn_block_adapter_forward.1} parent=79 // pred_check
          %p1052 = pneg %p329
        $region82: #{nrn_block_adapter_forward.1} parent=79 // pred_check_branch
          %1054 = sbr.rel (%p1052) target = $region84
        $region83: #{nrn_block_adapter_forward.1} parent=79 // pred_region
          %s1055 = sand.u32 %s314, 1
          %s1056 = scalar_lea.sflag [#allocation3], %s1055
          %s1057 = sand.u32 %s314, 1
          %s1058 = smul.addr %s1057, 16
          %s1059 = scalar_lea.vmem [#allocation2], %s1058
          %1061 = dma.done %s1056, 256
        $region84: #{nrn_block_adapter_forward.1} parent=79 // pred_fallthru
          _
      $region80: #{nrn_block_adapter_forward.1} parent=5 // pred_fallthru
        _
    $region6: #{nrn_block_adapter_forward.1} parent=1 // loop_footer
      %s26 = sadd.s32 1, %s22
    $region7: #{nrn_block_adapter_forward.1} parent=1 // loop_footer_branch
      %21 = sbr.rel target = $region3
    $region8: #{nrn_block_adapter_forward.1} parent=1 // loop_exit
      _
    %1062 = vsyncpa [#allocation3], 1
    %s1063 = scalar_lea.sflag [#allocation3], 1
    %1064 = vsyncpa %s1063, 1

</llo_original>
